<compile_context>
chip_gen: v5e
topology: v5e:2x2
jax: 0.10.0
libtpu: 0.0.40
codegen_flags: <defaults>
</compile_context>

<pallas_src>
import functools

import jax
import jax.numpy as jnp
from jax.experimental import pallas as pl
from jax.experimental.pallas import tpu as pltpu


# ----------------------------------------------------------------------------
# Kernel
# ----------------------------------------------------------------------------
def _mlp_kernel(n_layers, out_dims, matmul_dtype, *refs):
    """refs = (xT_ref, w_0 .. w_{L-1}, bT_ref, oT_ref).

    xT_ref : (in_dim, TM)        f32, batch on the lane axis (tiled)
    w_i    : (out_i, in_i)       matmul_dtype, PyTorch layout, resident in VMEM
    bT_ref : (max_out, n_layers) f32, column i = bias of layer i, resident
    oT_ref : (out_dim, TM)       f32
    """
    xT_ref = refs[0]
    w_refs = refs[1:1 + n_layers]
    bT_ref = refs[1 + n_layers]
    oT_ref = refs[2 + n_layers]

    h = xT_ref[...].astype(matmul_dtype)                         # (in_dim, TM)
    for i in range(n_layers):
        w = w_refs[i][...]                                       # (out_i, in_i)
        acc = jnp.dot(w, h, preferred_element_type=jnp.float32)  # (out_i, TM) f32
        acc = acc + bT_ref[0:out_dims[i], i:i + 1]               # lane-broadcast bias
        if i < n_layers - 1:
            h = jnp.tanh(acc).astype(matmul_dtype)               # f32 tanh on the EUP
        else:
            h = acc                                              # last Linear: no act
    oT_ref[...] = h.astype(oT_ref.dtype)


# ----------------------------------------------------------------------------
# Wrapper
# ----------------------------------------------------------------------------
def maxwell_pinn_forward(x, weights, biases, *, tm=4096, matmul_dtype=jnp.float32):
    """Fused forward pass of the MaxwellPINN MLP.

    x:       (batch, in_dim) float32
    weights: list of (out_i, in_i) arrays  (PyTorch nn.Linear .weight layout)
    biases:  list of (out_i,) arrays       (PyTorch nn.Linear .bias layout)
    returns: (batch, out_dim) float32
    """
    n_layers = len(weights)
    batch, in_dim = x.shape
    out_dims = tuple(int(w.shape[0]) for w in weights)
    out_dim = out_dims[-1]
    assert int(weights[0].shape[1]) == in_dim

    # Batch goes on the lane axis: one small transpose here, one on the output.
    x_T = jnp.asarray(x, jnp.float32).T                          # (in_dim, batch)

    # Resident weights, cast once to the matmul operand dtype.
    ws = [jnp.asarray(w, matmul_dtype) for w in weights]

    # Pack all biases into one resident (max_out, n_layers) f32 slab,
    # sublane-oriented so the in-kernel add is a plain lane broadcast.
    max_out = max(out_dims)
    bT = jnp.zeros((max_out, n_layers), jnp.float32)
    for i, b in enumerate(biases):
        bvec = jnp.asarray(b, jnp.float32).reshape(-1)
        bT = bT.at[:bvec.shape[0], i].set(bvec)

    # Batch tile (lanes): multiple of 128, big default to amortize per-step
    # overhead; clamped for tiny batches.  Uneven last tile handled by Pallas.
    lane = 128
    tm = max(lane, (int(tm) // lane) * lane)
    tm = min(tm, ((batch + lane - 1) // lane) * lane)
    grid = (pl.cdiv(batch, tm),)

    resident = lambda shape: pl.BlockSpec(tuple(shape), lambda i: (0, 0))
    in_specs = [pl.BlockSpec((in_dim, tm), lambda i: (0, i))]    # x_T, lane-tiled
    in_specs += [resident(w.shape) for w in ws]                  # resident weights
    in_specs += [resident(bT.shape)]                             # resident biases

    flops = 2 * batch * sum(int(w.shape[0]) * int(w.shape[1]) for w in weights)
    transcendentals = batch * int(sum(out_dims[:-1]))
    bytes_accessed = (4 * batch * (in_dim + out_dim)
                      + sum(4 * int(w.size) for w in weights)
                      + 4 * int(bT.size))

    kernel = functools.partial(_mlp_kernel, n_layers, out_dims, matmul_dtype)

    out_T = pl.pallas_call(
        kernel,
        out_shape=jax.ShapeDtypeStruct((out_dim, batch), jnp.float32),
        grid_spec=pltpu.PrefetchScalarGridSpec(
            num_scalar_prefetch=0,
            grid=grid,
            in_specs=in_specs,
            out_specs=pl.BlockSpec((out_dim, tm), lambda i: (0, i)),
        ),
        compiler_params=pltpu.CompilerParams(
            dimension_semantics=("parallel",),     # megacore-shardable on v7x
        ),
        cost_estimate=pl.CostEstimate(
            flops=int(flops),
            transcendentals=int(transcendentals),
            bytes_accessed=int(bytes_accessed)),
    )(x_T, *ws, bT)

    return out_T.T                                               # (batch, out_dim)


# ----------------------------------------------------------------------------
# Reference + deterministic params (PyTorch nn.Linear layout & init ranges)
# ----------------------------------------------------------------------------
def init_params(layers, key):
    weights, biases = [], []
    for i in range(len(layers) - 1):
        fan_in, fan_out = layers[i], layers[i + 1]
        key, kw, kb = jax.random.split(key, 3)
        bound = float(fan_in) ** -0.5
        w = jax.random.uniform(kw, (fan_out, fan_in), jnp.float32, -bound, bound)
        b = jax.random.uniform(kb, (fan_out,), jnp.float32, -bound, bound)
        weights.append(w)
        biases.append(b)
    return weights, biases


def reference_forward(x, weights, biases):
    h = x
    n = len(weights)
    for i in range(n):
        h = h @ weights[i].T + biases[i]
        if i < n - 1:
            h = jnp.tanh(h)
    return h


# ----------------------------------------------------------------------------
if __name__ == "__main__":
    # Typical Maxwell-PINN architecture: (x, y, t) -> 3 hidden layers -> 6 fields.
    layers = [3, 32, 32, 32, 6]
    batch = 200          # deliberately NOT a multiple of 128: exercises ragged tile

    key = jax.random.PRNGKey(0)
    key, kx = jax.random.split(key)
    x = jax.random.normal(kx, (batch, layers[0]), jnp.float32)
    weights, biases = init_params(layers, key)

    ref = reference_forward(x, weights, biases)

    # Full-f32 operand path (training default).
    out_f32 = jax.block_until_ready(
        maxwell_pinn_forward(x, weights, biases, matmul_dtype=jnp.float32))
    assert out_f32.shape == (batch, layers[-1])
    assert jnp.allclose(out_f32, ref, atol=2e-2, rtol=2e-2)

    # bf16-operand path (MXU-native on v5e/v6e/v7x), f32 accumulation/bias/tanh.
    out_bf16 = jax.block_until_ready(
        maxwell_pinn_forward(x, weights, biases, matmul_dtype=jnp.bfloat16))
    assert out_bf16.shape == (batch, layers[-1])
    assert jnp.allclose(out_bf16, ref, atol=5e-2, rtol=5e-2)

    print("KERNEL_OK")
</pallas_src>

<mosaic_0001>
module attributes {stable_mosaic.version = 11 : i64} {
  func.func @_mlp_kernel(%arg0: i32, %arg1: memref<3x256xf32, #tpu.memory_space<vmem>>, %arg2: memref<32x3xf32, #tpu.memory_space<vmem>>, %arg3: memref<32x32xf32, #tpu.memory_space<vmem>>, %arg4: memref<32x32xf32, #tpu.memory_space<vmem>>, %arg5: memref<6x32xf32, #tpu.memory_space<vmem>>, %arg6: memref<32x4xf32, #tpu.memory_space<vmem>>, %arg7: memref<6x256xf32, #tpu.memory_space<vmem>>) attributes {dimension_semantics = [#tpu.dimension_semantics<parallel>], iteration_bounds = array<i64: 1>, scalar_prefetch = 0 : i64, scratch_operands = 0 : i64, tpu.core_type = #tpu.core_type<tc>, window_params = [{transform_indices = @transform_0, window_bounds = array<i64: 3, 256>}, {pipeline_mode = #tpu.pipeline_mode<synchronous>, transform_indices = @transform_1, window_bounds = array<i64: 32, 3>}, {pipeline_mode = #tpu.pipeline_mode<synchronous>, transform_indices = @transform_2, window_bounds = array<i64: 32, 32>}, {pipeline_mode = #tpu.pipeline_mode<synchronous>, transform_indices = @transform_3, window_bounds = array<i64: 32, 32>}, {pipeline_mode = #tpu.pipeline_mode<synchronous>, transform_indices = @transform_4, window_bounds = array<i64: 6, 32>}, {pipeline_mode = #tpu.pipeline_mode<synchronous>, transform_indices = @transform_5, window_bounds = array<i64: 32, 4>}, {transform_indices = @transform_6, window_bounds = array<i64: 6, 256>}]} {
    %c0 = arith.constant 0 : index
    %c0_0 = arith.constant 0 : index
    %0 = vector.load %arg1[%c0, %c0_0] : memref<3x256xf32, #tpu.memory_space<vmem>>, vector<3x256xf32>
    %c0_1 = arith.constant 0 : index
    %c0_2 = arith.constant 0 : index
    %1 = vector.load %arg2[%c0_1, %c0_2] : memref<32x3xf32, #tpu.memory_space<vmem>>, vector<32x3xf32>
    %cst = arith.constant dense<0.000000e+00> : vector<32x256xf32>
    %2 = tpu.matmul %1, %0, %cst {dimension_numbers = #tpu.dot_dimension_numbers<[1], [0], [0], [1], [0, 0, 1, 1], [], []>} : vector<32x3xf32>, vector<3x256xf32>, vector<32x256xf32> -> vector<32x256xf32>
    %c0_3 = arith.constant 0 : index
    %c0_4 = arith.constant 0 : index
    %3 = vector.load %arg6[%c0_3, %c0_4] : memref<32x4xf32, #tpu.memory_space<vmem>>, vector<32x1xf32>
    %4 = vector.broadcast %3 : vector<32x1xf32> to vector<32x256xf32>
    %5 = arith.addf %2, %4 : vector<32x256xf32>
    %6 = math.tanh %5 : vector<32x256xf32>
    %c0_5 = arith.constant 0 : index
    %c0_6 = arith.constant 0 : index
    %7 = vector.load %arg3[%c0_5, %c0_6] : memref<32x32xf32, #tpu.memory_space<vmem>>, vector<32x32xf32>
    %cst_7 = arith.constant dense<0.000000e+00> : vector<32x256xf32>
    %8 = tpu.matmul %7, %6, %cst_7 {dimension_numbers = #tpu.dot_dimension_numbers<[1], [0], [0], [1], [0, 0, 1, 1], [], []>} : vector<32x32xf32>, vector<32x256xf32>, vector<32x256xf32> -> vector<32x256xf32>
    %c0_8 = arith.constant 0 : index
    %c1 = arith.constant 1 : index
    %9 = vector.load %arg6[%c0_8, %c1] : memref<32x4xf32, #tpu.memory_space<vmem>>, vector<32x1xf32>
    %10 = vector.broadcast %9 : vector<32x1xf32> to vector<32x256xf32>
    %11 = arith.addf %8, %10 : vector<32x256xf32>
    %12 = math.tanh %11 : vector<32x256xf32>
    %c0_9 = arith.constant 0 : index
    %c0_10 = arith.constant 0 : index
    %13 = vector.load %arg4[%c0_9, %c0_10] : memref<32x32xf32, #tpu.memory_space<vmem>>, vector<32x32xf32>
    %cst_11 = arith.constant dense<0.000000e+00> : vector<32x256xf32>
    %14 = tpu.matmul %13, %12, %cst_11 {dimension_numbers = #tpu.dot_dimension_numbers<[1], [0], [0], [1], [0, 0, 1, 1], [], []>} : vector<32x32xf32>, vector<32x256xf32>, vector<32x256xf32> -> vector<32x256xf32>
    %c0_12 = arith.constant 0 : index
    %c2 = arith.constant 2 : index
    %15 = vector.load %arg6[%c0_12, %c2] : memref<32x4xf32, #tpu.memory_space<vmem>>, vector<32x1xf32>
    %16 = vector.broadcast %15 : vector<32x1xf32> to vector<32x256xf32>
    %17 = arith.addf %14, %16 : vector<32x256xf32>
    %18 = math.tanh %17 : vector<32x256xf32>
    %c0_13 = arith.constant 0 : index
    %c0_14 = arith.constant 0 : index
    %19 = vector.load %arg5[%c0_13, %c0_14] : memref<6x32xf32, #tpu.memory_space<vmem>>, vector<6x32xf32>
    %cst_15 = arith.constant dense<0.000000e+00> : vector<6x256xf32>
    %20 = tpu.matmul %19, %18, %cst_15 {dimension_numbers = #tpu.dot_dimension_numbers<[1], [0], [0], [1], [0, 0, 1, 1], [], []>} : vector<6x32xf32>, vector<32x256xf32>, vector<6x256xf32> -> vector<6x256xf32>
    %c0_16 = arith.constant 0 : index
    %c3 = arith.constant 3 : index
    %21 = vector.load %arg6[%c0_16, %c3] : memref<32x4xf32, #tpu.memory_space<vmem>>, vector<6x1xf32>
    %22 = vector.broadcast %21 : vector<6x1xf32> to vector<6x256xf32>
    %23 = arith.addf %20, %22 : vector<6x256xf32>
    %c0_17 = arith.constant 0 : index
    %c0_18 = arith.constant 0 : index
    %24 = vector.load %arg7[%c0_17, %c0_18] : memref<6x256xf32, #tpu.memory_space<vmem>>, vector<6x256xf32>
    tpu.vector_store %arg7[%c0_17, %c0_18], %23 {strides = array<i32>} : memref<6x256xf32, #tpu.memory_space<vmem>>, vector<6x256xf32>,
    return
  }
  func.func @transform_0(%arg0: i32) -> (i32, i32) {
    %c0_i32 = arith.constant 0 : i32
    %c0_i32_0 = arith.constant 0 : i32
    return %c0_i32, %arg0 : i32, i32
  }
  func.func @transform_1(%arg0: i32) -> (i32, i32) {
    %c0_i32 = arith.constant 0 : i32
    %c0_i32_0 = arith.constant 0 : i32
    %c0_i32_1 = arith.constant 0 : i32
    return %c0_i32, %c0_i32_0 : i32, i32
  }
  func.func @transform_2(%arg0: i32) -> (i32, i32) {
    %c0_i32 = arith.constant 0 : i32
    %c0_i32_0 = arith.constant 0 : i32
    %c0_i32_1 = arith.constant 0 : i32
    return %c0_i32, %c0_i32_0 : i32, i32
  }
  func.func @transform_3(%arg0: i32) -> (i32, i32) {
    %c0_i32 = arith.constant 0 : i32
    %c0_i32_0 = arith.constant 0 : i32
    %c0_i32_1 = arith.constant 0 : i32
    return %c0_i32, %c0_i32_0 : i32, i32
  }
  func.func @transform_4(%arg0: i32) -> (i32, i32) {
    %c0_i32 = arith.constant 0 : i32
    %c0_i32_0 = arith.constant 0 : i32
    %c0_i32_1 = arith.constant 0 : i32
    return %c0_i32, %c0_i32_0 : i32, i32
  }
  func.func @transform_5(%arg0: i32) -> (i32, i32) {
    %c0_i32 = arith.constant 0 : i32
    %c0_i32_0 = arith.constant 0 : i32
    %c0_i32_1 = arith.constant 0 : i32
    return %c0_i32, %c0_i32_0 : i32, i32
  }
  func.func @transform_6(%arg0: i32) -> (i32, i32) {
    %c0_i32 = arith.constant 0 : i32
    %c0_i32_0 = arith.constant 0 : i32
    return %c0_i32, %arg0 : i32, i32
  }
}

</mosaic_0001>

<llo_original>
// kernel: tpu_custom_call.1
$region0: #{tpu_custom_call.1}
  #allocation0 [shape = 'u32[]', space=smem, size = 0x4, offset = 0x4, fixed_abs, tag = 'smem constant byte address 0x4 - core index']
  #allocation1 [shape = 'u32[72,128]{1,0:T(1,128)}', space=vmem, size = 0x9000, scoped, tag = 'internal scratch']
  %s0 = inlined_call_operand.vmem [shape: f32[3,200], index: 0, kind: input, shape index: {}]
  %s1 = inlined_call_operand.vmem [shape: f32[32,3], index: 1, kind: input, shape index: {}]
  %s2 = inlined_call_operand.vmem [shape: f32[32,32], index: 2, kind: input, shape index: {}]
  %s3 = inlined_call_operand.vmem [shape: f32[32,32], index: 3, kind: input, shape index: {}]
  %s4 = inlined_call_operand.hbm [shape: f32[6,32], index: 4, kind: input, shape index: {}]
  %s5 = inlined_call_operand.vmem [shape: f32[32,4], index: 5, kind: input, shape index: {}]
  %s6 = inlined_call_operand.hbm [shape: f32[6,200], index: 6, kind: output, shape index: {}]
  %s7 = sld [smem:[#allocation0]]
  $region38: #{tpu_custom_call.1} parent=0
    _
  %s9 = ssub.s32 1, %s7
  %s10 = scalar_select 0, %s9, %s7
  $region1: #{tpu_custom_call.1} parent=0
    #allocation2 [shape = 'u8[4096]{0}', space=vmem, size = 0x1000, scoped, tag = 'input window, operand 4, single buffered']
    #allocation3 [shape = 's32[1]{0}', space=sflag, size = 0x4, scoped, tag = 'scoped memory for tpu_custom_call.1']
    #allocation4 [shape = 's32[1]{0}', space=sflag, size = 0x4, scoped, tag = 'scoped memory for tpu_custom_call.1']
    #allocation5 [shape = 'u8[8192]{0}', space=vmem, size = 0x2000, scoped, tag = 'output window, operand 0, single buffered']
    %11 = vsyncpa [#allocation3], 0
    %12 = vsyncpa [#allocation4], 0
    // Predicated region
    $region2: #{tpu_custom_call.1} parent=1 // pred_check
      _
    $region3: #{tpu_custom_call.1} parent=1 // pred_check_branch
      %14 = sbr.rel (0) target = $region5
    $region4: #{tpu_custom_call.1} parent=1 // pred_region
      _
    $region5: #{tpu_custom_call.1} parent=1 // pred_fallthru
      _
    // Predicated region
    $region6: #{tpu_custom_call.1} parent=1 // pred_check
      _
    $region7: #{tpu_custom_call.1} parent=1 // pred_check_branch
      %16 = sbr.rel (0) target = $region9
    $region8: #{tpu_custom_call.1} parent=1 // pred_region
      _
    $region9: #{tpu_custom_call.1} parent=1 // pred_fallthru
      _
    // Predicated region
    $region10: #{tpu_custom_call.1} parent=1 // pred_check
      _
    $region11: #{tpu_custom_call.1} parent=1 // pred_check_branch
      %18 = sbr.rel (0) target = $region13
    $region12: #{tpu_custom_call.1} parent=1 // pred_region
      _
    $region13: #{tpu_custom_call.1} parent=1 // pred_fallthru
      _
    // Predicated region
    $region14: #{tpu_custom_call.1} parent=1 // pred_check
      _
    $region15: #{tpu_custom_call.1} parent=1 // pred_check_branch
      %20 = sbr.rel (0) target = $region17
    $region16: #{tpu_custom_call.1} parent=1 // pred_region
      _
    $region17: #{tpu_custom_call.1} parent=1 // pred_fallthru
      _
    // Predicated region
    $region18: #{tpu_custom_call.1} parent=1 // pred_check
      _
    $region19: #{tpu_custom_call.1} parent=1 // pred_check_branch
      %22 = sbr.rel (0) target = $region21
    $region20: #{tpu_custom_call.1} parent=1 // pred_region
      %24 = vsyncadd [#allocation3], 0
      %s26 = sshll.u32 %s4, 4
      %s27 = int_to_ptr.hbm [resolvable:$true] %s26
      %s28 = sshll.u32 [#allocation2], 4
      %s29 = int_to_ptr.vmem [resolvable:$true] %s28
      %31 = dma.hbm_to_vmem [thread:$0]  %s27, 128, %s29, [#allocation3]
    $region21: #{tpu_custom_call.1} parent=1 // pred_fallthru
      _
    // Predicated region
    $region22: #{tpu_custom_call.1} parent=1 // pred_check
      _
    $region23: #{tpu_custom_call.1} parent=1 // pred_check_branch
      %33 = sbr.rel (0) target = $region25
    $region24: #{tpu_custom_call.1} parent=1 // pred_region
      _
    $region25: #{tpu_custom_call.1} parent=1 // pred_fallthru
      _
    // Predicated region
    $region26: #{tpu_custom_call.1} parent=1 // pred_check
      _
    $region27: #{tpu_custom_call.1} parent=1 // pred_check_branch
      %35 = sbr.rel (0) target = $region29
    $region28: #{tpu_custom_call.1} parent=1 // pred_region
      %37 = dma.done [#allocation3], 128
    $region29: #{tpu_custom_call.1} parent=1 // pred_fallthru
      _
    %v38 = vld [vmem:[%s0] sm:$0x77]
    %v39 = vld [vmem:[%s1] sm:$0xff]
    %v40 = vld [vmem:[%s1 + $0x8] sm:$0xff]
    %v41 = vld [vmem:[%s1 + $0x10] sm:$0xff]
    %v42 = vld [vmem:[%s1 + $0x18] sm:$0xff]
    %v43 = vld [vmem:[%s5] sm:$0xff]
    %v44 = vld [vmem:[%s5 + $0x8] sm:$0xff]
    %v45 = vld [vmem:[%s5 + $0x10] sm:$0xff]
    %v46 = vld [vmem:[%s5 + $0x18] sm:$0xff]
    %48 = vset.pattern.permute.xlu0 0
    %49 = vperm.xlu0 %48, %v43
    %v50 = vpop.permute.xlu0 %49
    %53 = vset.pattern.permute.xlu0 0
    %54 = vperm.xlu0 %53, %v44
    %v55 = vpop.permute.xlu0 %54
    %58 = vset.pattern.permute.xlu0 0
    %59 = vperm.xlu0 %58, %v45
    %v60 = vpop.permute.xlu0 %59
    %63 = vset.pattern.permute.xlu0 0
    %64 = vperm.xlu0 %63, %v46
    %v65 = vpop.permute.xlu0 %64
    %68 = vst [vmem:[#allocation1] ss:$2 sm:$0xff] %v38
    %v69 = vld.sshfl [vmem:[#allocation1] sm:$0xff pattern:$0x75316420]
    %v70 = vld.sshfl [vmem:[#allocation1 + $0x8] sm:$0xff pattern:$0x75316420]
    %vm71 = vcmask 23552
    %v73 = vsel %vm71, %v39, 0
    %v76 = vsel %vm71, %v40, 0
    %v79 = vsel %vm71, %v41, 0
    %v82 = vsel %vm71, %v42, 0
    %vm84 = vcmask 1042432
    %v85 = vsel %vm84, %v69, 0
    %v87 = vsel %vm84, %v70, 0
    %89 = vmatpush.msra.mxu0 0.0
    %90 = vmatpush.msra.mxu0 0.0
    %91 = vmatpush.msra.mxu0 0.0
    %92 = vmatpush.msra.mxu0 0.0
    %93 = vmatpush.msra.mxu0 0.0
    %94 = vmatpush.msra.mxu0 0.0
    %95 = vmatpush.msra.mxu0 0.0
    %96 = vmatpush.msra.mxu0 0.0
    %97 = vmatpush.msra.mxu0 0.0
    %98 = vmatpush.msra.mxu0 0.0
    %99 = vmatpush.msra.mxu0 0.0
    %100 = vmatpush.msra.mxu0 0.0
    %101 = vmatpush.msra.mxu0 0.0
    %102 = vmatpush.msra.mxu0 0.0
    %103 = vmatpush.msra.mxu0 0.0
    %104 = vmatpush.msra.mxu0 %v85
    %105 = vmatmul.f32.gmra.mxu0 %v73
    %v106 = vpop.f32.mrf.mxu0
    %v107 = vadd.f32 %v50, %v106
    %108 = vmatmul.f32.gmra.mxu0 %v76
    %v109 = vpop.f32.mrf.mxu0
    %v110 = vadd.f32 %v55, %v109
    %111 = vmatmul.f32.gmra.mxu0 %v79
    %v112 = vpop.f32.mrf.mxu0
    %v113 = vadd.f32 %v60, %v112
    %114 = vmatmul.f32.gmra.mxu0 %v82
    %v115 = vpop.f32.mrf.mxu0
    %v116 = vadd.f32 %v65, %v115
    %117 = vdwg.mxu0
    %118 = vmatpush.msra.mxu0 0.0
    %119 = vmatpush.msra.mxu0 0.0
    %120 = vmatpush.msra.mxu0 0.0
    %121 = vmatpush.msra.mxu0 0.0
    %122 = vmatpush.msra.mxu0 0.0
    %123 = vmatpush.msra.mxu0 0.0
    %124 = vmatpush.msra.mxu0 0.0
    %125 = vmatpush.msra.mxu0 0.0
    %126 = vmatpush.msra.mxu0 0.0
    %127 = vmatpush.msra.mxu0 0.0
    %128 = vmatpush.msra.mxu0 0.0
    %129 = vmatpush.msra.mxu0 0.0
    %130 = vmatpush.msra.mxu0 0.0
    %131 = vmatpush.msra.mxu0 0.0
    %132 = vmatpush.msra.mxu0 0.0
    %133 = vmatpush.msra.mxu0 %v87
    %134 = vmatmul.f32.gmra.mxu0 %v73
    %v135 = vpop.f32.mrf.mxu0
    %v136 = vadd.f32 %v50, %v135
    %137 = vmatmul.f32.gmra.mxu0 %v76
    %v138 = vpop.f32.mrf.mxu0
    %v139 = vadd.f32 %v55, %v138
    %140 = vmatmul.f32.gmra.mxu0 %v79
    %v141 = vpop.f32.mrf.mxu0
    %v142 = vadd.f32 %v60, %v141
    %143 = vmatmul.f32.gmra.mxu0 %v82
    %v144 = vpop.f32.mrf.mxu0
    %v145 = vadd.f32 %v65, %v144
    %146 = vdwg.mxu0
    %v147 = vtanh.pop %v107
    %v148 = vtanh.pop %v136
    %v149 = vtanh.pop %v110
    %v150 = vtanh.pop %v139
    %v151 = vtanh.pop %v113
    %v152 = vtanh.pop %v142
    %v153 = vtanh.pop %v116
    %v154 = vtanh.pop %v145
    %v155 = vld [vmem:[%s2] sm:$0xff]
    %v156 = vld [vmem:[%s2 + $0x8] sm:$0xff]
    %v157 = vld [vmem:[%s2 + $0x10] sm:$0xff]
    %v158 = vld [vmem:[%s2 + $0x18] sm:$0xff]
    %v159 = vld [vmem:[%s5] sm:$0xff]
    %v160 = vld [vmem:[%s5 + $0x8] sm:$0xff]
    %v161 = vld [vmem:[%s5 + $0x10] sm:$0xff]
    %v162 = vld [vmem:[%s5 + $0x18] sm:$0xff]
    %164 = vset.pattern.permute.xlu0 1
    %165 = vperm.xlu0 %164, %v159
    %v166 = vpop.permute.xlu0 %165
    %169 = vset.pattern.permute.xlu0 1
    %170 = vperm.xlu0 %169, %v160
    %v171 = vpop.permute.xlu0 %170
    %174 = vset.pattern.permute.xlu0 1
    %175 = vperm.xlu0 %174, %v161
    %v176 = vpop.permute.xlu0 %175
    %179 = vset.pattern.permute.xlu0 1
    %180 = vperm.xlu0 %179, %v162
    %v181 = vpop.permute.xlu0 %180
    %vm183 = vcmask 261120
    %v185 = vsel %vm183, %v155, 0
    %v188 = vsel %vm183, %v156, 0
    %v191 = vsel %vm183, %v157, 0
    %v194 = vsel %vm183, %v158, 0
    %196 = vmatpush.msra.mxu0 0.0
    %197 = vmatpush.msra.mxu0 0.0
    %198 = vmatpush.msra.mxu0 0.0
    %199 = vmatpush.msra.mxu0 0.0
    %200 = vmatpush.msra.mxu0 0.0
    %201 = vmatpush.msra.mxu0 0.0
    %202 = vmatpush.msra.mxu0 0.0
    %203 = vmatpush.msra.mxu0 0.0
    %204 = vmatpush.msra.mxu0 0.0
    %205 = vmatpush.msra.mxu0 0.0
    %206 = vmatpush.msra.mxu0 0.0
    %207 = vmatpush.msra.mxu0 0.0
    %208 = vmatpush.msra.mxu0 %v153
    %209 = vmatpush.msra.mxu0 %v151
    %210 = vmatpush.msra.mxu0 %v149
    %211 = vmatpush.msra.mxu0 %v147
    %212 = vmatmul.f32.gmra.mxu0 %v185
    %v213 = vpop.f32.mrf.mxu0
    %v214 = vadd.f32 %v166, %v213
    %215 = vmatmul.f32.gmra.mxu0 %v188
    %v216 = vpop.f32.mrf.mxu0
    %v217 = vadd.f32 %v171, %v216
    %218 = vmatmul.f32.gmra.mxu0 %v191
    %v219 = vpop.f32.mrf.mxu0
    %v220 = vadd.f32 %v176, %v219
    %221 = vmatmul.f32.gmra.mxu0 %v194
    %v222 = vpop.f32.mrf.mxu0
    %v223 = vadd.f32 %v181, %v222
    %224 = vdwg.mxu0
    %225 = vmatpush.msra.mxu0 0.0
    %226 = vmatpush.msra.mxu0 0.0
    %227 = vmatpush.msra.mxu0 0.0
    %228 = vmatpush.msra.mxu0 0.0
    %229 = vmatpush.msra.mxu0 0.0
    %230 = vmatpush.msra.mxu0 0.0
    %231 = vmatpush.msra.mxu0 0.0
    %232 = vmatpush.msra.mxu0 0.0
    %233 = vmatpush.msra.mxu0 0.0
    %234 = vmatpush.msra.mxu0 0.0
    %235 = vmatpush.msra.mxu0 0.0
    %236 = vmatpush.msra.mxu0 0.0
    %237 = vmatpush.msra.mxu0 %v154
    %238 = vmatpush.msra.mxu0 %v152
    %239 = vmatpush.msra.mxu0 %v150
    %240 = vmatpush.msra.mxu0 %v148
    %241 = vmatmul.f32.gmra.mxu0 %v185
    %v242 = vpop.f32.mrf.mxu0
    %v243 = vadd.f32 %v166, %v242
    %244 = vmatmul.f32.gmra.mxu0 %v188
    %v245 = vpop.f32.mrf.mxu0
    %v246 = vadd.f32 %v171, %v245
    %247 = vmatmul.f32.gmra.mxu0 %v191
    %v248 = vpop.f32.mrf.mxu0
    %v249 = vadd.f32 %v176, %v248
    %250 = vmatmul.f32.gmra.mxu0 %v194
    %v251 = vpop.f32.mrf.mxu0
    %v252 = vadd.f32 %v181, %v251
    %253 = vdwg.mxu0
    %v254 = vtanh.pop %v214
    %v255 = vtanh.pop %v243
    %v256 = vtanh.pop %v217
    %v257 = vtanh.pop %v246
    %v258 = vtanh.pop %v220
    %v259 = vtanh.pop %v249
    %v260 = vtanh.pop %v223
    %v261 = vtanh.pop %v252
    %v262 = vld [vmem:[%s3] sm:$0xff]
    %v263 = vld [vmem:[%s3 + $0x8] sm:$0xff]
    %v264 = vld [vmem:[%s3 + $0x10] sm:$0xff]
    %v265 = vld [vmem:[%s3 + $0x18] sm:$0xff]
    %266 = vset.pattern.permute.xlu0 2
    %267 = vperm.xlu0 %266, %v159
    %v268 = vpop.permute.xlu0 %267
    %270 = vset.pattern.permute.xlu0 2
    %271 = vperm.xlu0 %270, %v160
    %v272 = vpop.permute.xlu0 %271
    %274 = vset.pattern.permute.xlu0 2
    %275 = vperm.xlu0 %274, %v161
    %v276 = vpop.permute.xlu0 %275
    %278 = vset.pattern.permute.xlu0 2
    %279 = vperm.xlu0 %278, %v162
    %v280 = vpop.permute.xlu0 %279
    %v283 = vsel %vm183, %v262, 0
    %v286 = vsel %vm183, %v263, 0
    %v289 = vsel %vm183, %v264, 0
    %v292 = vsel %vm183, %v265, 0
    %294 = vmatpush.msra.mxu0 0.0
    %295 = vmatpush.msra.mxu0 0.0
    %296 = vmatpush.msra.mxu0 0.0
    %297 = vmatpush.msra.mxu0 0.0
    %298 = vmatpush.msra.mxu0 0.0
    %299 = vmatpush.msra.mxu0 0.0
    %300 = vmatpush.msra.mxu0 0.0
    %301 = vmatpush.msra.mxu0 0.0
    %302 = vmatpush.msra.mxu0 0.0
    %303 = vmatpush.msra.mxu0 0.0
    %304 = vmatpush.msra.mxu0 0.0
    %305 = vmatpush.msra.mxu0 0.0
    %306 = vmatpush.msra.mxu0 %v260
    %307 = vmatpush.msra.mxu0 %v258
    %308 = vmatpush.msra.mxu0 %v256
    %309 = vmatpush.msra.mxu0 %v254
    %310 = vmatmul.f32.gmra.mxu0 %v283
    %v311 = vpop.f32.mrf.mxu0
    %v312 = vadd.f32 %v268, %v311
    %313 = vmatmul.f32.gmra.mxu0 %v286
    %v314 = vpop.f32.mrf.mxu0
    %v315 = vadd.f32 %v272, %v314
    %316 = vmatmul.f32.gmra.mxu0 %v289
    %v317 = vpop.f32.mrf.mxu0
    %v318 = vadd.f32 %v276, %v317
    %319 = vmatmul.f32.gmra.mxu0 %v292
    %v320 = vpop.f32.mrf.mxu0
    %v321 = vadd.f32 %v280, %v320
    %322 = vdwg.mxu0
    %323 = vmatpush.msra.mxu0 0.0
    %324 = vmatpush.msra.mxu0 0.0
    %325 = vmatpush.msra.mxu0 0.0
    %326 = vmatpush.msra.mxu0 0.0
    %327 = vmatpush.msra.mxu0 0.0
    %328 = vmatpush.msra.mxu0 0.0
    %329 = vmatpush.msra.mxu0 0.0
    %330 = vmatpush.msra.mxu0 0.0
    %331 = vmatpush.msra.mxu0 0.0
    %332 = vmatpush.msra.mxu0 0.0
    %333 = vmatpush.msra.mxu0 0.0
    %334 = vmatpush.msra.mxu0 0.0
    %335 = vmatpush.msra.mxu0 %v261
    %336 = vmatpush.msra.mxu0 %v259
    %337 = vmatpush.msra.mxu0 %v257
    %338 = vmatpush.msra.mxu0 %v255
    %339 = vmatmul.f32.gmra.mxu0 %v283
    %v340 = vpop.f32.mrf.mxu0
    %v341 = vadd.f32 %v268, %v340
    %342 = vmatmul.f32.gmra.mxu0 %v286
    %v343 = vpop.f32.mrf.mxu0
    %v344 = vadd.f32 %v272, %v343
    %345 = vmatmul.f32.gmra.mxu0 %v289
    %v346 = vpop.f32.mrf.mxu0
    %v347 = vadd.f32 %v276, %v346
    %348 = vmatmul.f32.gmra.mxu0 %v292
    %v349 = vpop.f32.mrf.mxu0
    %v350 = vadd.f32 %v280, %v349
    %351 = vdwg.mxu0
    %v352 = vtanh.pop %v312
    %v353 = vtanh.pop %v341
    %v354 = vtanh.pop %v315
    %v355 = vtanh.pop %v344
    %v356 = vtanh.pop %v318
    %v357 = vtanh.pop %v347
    %v358 = vtanh.pop %v321
    %v359 = vtanh.pop %v350
    %v360 = vld [vmem:[#allocation2] sm:$0x3f]
    %v361 = vld [vmem:[%s5] sm:$0x3f]
    %363 = vset.pattern.permute.xlu0 3
    %364 = vperm.xlu0 %363, %v361
    %v365 = vpop.permute.xlu0 %364
    %v368 = vsel %vm183, %v360, 0
    %370 = vmatpush.msra.mxu0 0.0
    %371 = vmatpush.msra.mxu0 0.0
    %372 = vmatpush.msra.mxu0 0.0
    %373 = vmatpush.msra.mxu0 0.0
    %374 = vmatpush.msra.mxu0 0.0
    %375 = vmatpush.msra.mxu0 0.0
    %376 = vmatpush.msra.mxu0 0.0
    %377 = vmatpush.msra.mxu0 0.0
    %378 = vmatpush.msra.mxu0 0.0
    %379 = vmatpush.msra.mxu0 0.0
    %380 = vmatpush.msra.mxu0 0.0
    %381 = vmatpush.msra.mxu0 0.0
    %382 = vmatpush.msra.mxu0 %v358
    %383 = vmatpush.msra.mxu0 %v356
    %384 = vmatpush.msra.mxu0 %v354
    %385 = vmatpush.msra.mxu0 %v352
    %386 = vmatmul.f32.gmra.mxu0 %v368
    %v387 = vpop.f32.mrf.mxu0
    %v388 = vadd.f32 %v365, %v387
    %389 = vdwg.mxu0
    %390 = vmatpush.msra.mxu0 0.0
    %391 = vmatpush.msra.mxu0 0.0
    %392 = vmatpush.msra.mxu0 0.0
    %393 = vmatpush.msra.mxu0 0.0
    %394 = vmatpush.msra.mxu0 0.0
    %395 = vmatpush.msra.mxu0 0.0
    %396 = vmatpush.msra.mxu0 0.0
    %397 = vmatpush.msra.mxu0 0.0
    %398 = vmatpush.msra.mxu0 0.0
    %399 = vmatpush.msra.mxu0 0.0
    %400 = vmatpush.msra.mxu0 0.0
    %401 = vmatpush.msra.mxu0 0.0
    %402 = vmatpush.msra.mxu0 %v359
    %403 = vmatpush.msra.mxu0 %v357
    %404 = vmatpush.msra.mxu0 %v355
    %405 = vmatpush.msra.mxu0 %v353
    %406 = vmatmul.f32.gmra.mxu0 %v368
    %v407 = vpop.f32.mrf.mxu0
    %v408 = vadd.f32 %v365, %v407
    %409 = vdwg.mxu0
    %410 = vst [vmem:[#allocation5] sm:$0x3f] %v388
    %411 = vst [vmem:[#allocation5 + $0x8] sm:$0x3f] %v408
    // Predicated region
    $region30: #{tpu_custom_call.1} parent=1 // pred_check
      _
    $region31: #{tpu_custom_call.1} parent=1 // pred_check_branch
      %413 = sbr.rel (0) target = $region33
    $region32: #{tpu_custom_call.1} parent=1 // pred_region
      %415 = vsyncadd [#allocation4], 0
      %s417 = sshll.u32 [#allocation5], 4
      %s418 = int_to_ptr.vmem [resolvable:$true] %s417
      %s419 = sshll.u32 %s6, 4
      %s420 = int_to_ptr.hbm [resolvable:$true] %s419
      %422 = dma.vmem_to_hbm [thread:$0]  %s418, 256, %s420, [#allocation4]
    $region33: #{tpu_custom_call.1} parent=1 // pred_fallthru
      _
    // Predicated region
    $region34: #{tpu_custom_call.1} parent=1 // pred_check
      _
    $region35: #{tpu_custom_call.1} parent=1 // pred_check_branch
      %424 = sbr.rel (0) target = $region37
    $region36: #{tpu_custom_call.1} parent=1 // pred_region
      %426 = dma.done [#allocation4], 256
    $region37: #{tpu_custom_call.1} parent=1 // pred_fallthru
      _
    %427 = vsyncpa [#allocation3], 1
    %428 = vsyncpa [#allocation4], 1

</llo_original>
